<compile_context>
chip_gen: v6e
topology: v6e:2x2x1
jax: 0.10.0
libtpu: 0.0.40
codegen_flags: <defaults>
</compile_context>

<pallas_src>
import jax
import jax.numpy as jnp
from jax.experimental import pallas as pl
from jax.experimental.pallas import tpu as pltpu

LANE = 128


def _round_up(n, m):
    return ((n + m - 1) // m) * m


def mlp_fused_kernel(x_ref, wf_ref, bf_ref, o_ref):
    # x_ref: (TB, F)   wf_ref: (F, Lp)   bf_ref: (1, Lp)   o_ref: (TB, Lp)
    y = jnp.dot(x_ref[...], wf_ref[...], preferred_element_type=jnp.float32)
    o_ref[...] = (y + bf_ref[...]).astype(o_ref.dtype)


def prepare_params(w1, b1, w2, b2):
    """One-time parameter preprocessing (hoisted out of the per-call path).

    w1: (F, H)  b1: (H,)  w2: (H, L)  b2: (L,)  -- W stored as (in, out).

    Folds the two linears (exact: no nonlinearity in between) and pads the
    label dim up to 128 lanes with zeros so the single matmul and the output
    store are lane-dense.  Padded columns are inert.
    """
    F, H = w1.shape
    L = w2.shape[1]
    Lp = _round_up(L, LANE)
    wf = w1 @ w2            # (F, L)
    bf = b1 @ w2 + b2       # (L,)
    wfp = jnp.zeros((F, Lp), wf.dtype).at[:, :L].set(wf)
    bfp = jnp.zeros((1, Lp), bf.dtype).at[0, :L].set(bf)
    return wfp, bfp, L


def _cost(B, F, Lp, itemsize):
    return pl.CostEstimate(
        flops=2 * B * F * Lp,
        transcendentals=0,
        bytes_accessed=itemsize * (B * F + F * Lp + Lp + B * Lp),
    )


def model_multinomial_forward(x, wfp, bfp, n_label):
    """Small/medium-batch path: single block, no grid, no pipelining overhead."""
    B, F = x.shape
    Lp = wfp.shape[1]
    itemsize = jnp.dtype(x.dtype).itemsize
    vmem = pl.BlockSpec(memory_space=pltpu.MemorySpace.VMEM)
    out = pl.pallas_call(
        mlp_fused_kernel,
        out_shape=jax.ShapeDtypeStruct((B, Lp), x.dtype),
        in_specs=[vmem, vmem, vmem],
        out_specs=vmem,
        cost_estimate=_cost(B, F, Lp, itemsize),
    )(x, wfp, bfp)
    return out[:, :n_label]


def model_multinomial_forward_batched(x, wfp, bfp, n_label, tb=2048):
    """Large-batch path: batch tiled (ragged last tile handled by Pallas),
    weights VMEM-resident via constant index maps, batch axis parallel
    (megacore-sharded on v7x; harmless no-op on v5e/v6e)."""
    B, F = x.shape
    Lp = wfp.shape[1]
    itemsize = jnp.dtype(x.dtype).itemsize
    grid = (pl.cdiv(B, tb),)
    out = pl.pallas_call(
        mlp_fused_kernel,
        out_shape=jax.ShapeDtypeStruct((B, Lp), x.dtype),
        grid_spec=pltpu.PrefetchScalarGridSpec(
            num_scalar_prefetch=0,
            grid=grid,
            in_specs=[
                pl.BlockSpec((tb, F), lambda i: (i, 0)),   # x: tiled over batch
                pl.BlockSpec((F, Lp), lambda i: (0, 0)),   # folded weight: resident
                pl.BlockSpec((1, Lp), lambda i: (0, 0)),   # folded bias: resident
            ],
            out_specs=pl.BlockSpec((tb, Lp), lambda i: (i, 0)),
        ),
        compiler_params=pltpu.CompilerParams(
            dimension_semantics=("parallel",),
        ),
        cost_estimate=_cost(B, F, Lp, itemsize),
    )(x, wfp, bfp)
    return out[:, :n_label]


def forward(x, wfp, bfp, n_label, gridless_max_rows=4096, tb=2048):
    """Dispatcher: gridless path up to a few thousand rows, tiled path beyond."""
    if x.shape[0] <= gridless_max_rows:
        return model_multinomial_forward(x, wfp, bfp, n_label)
    return model_multinomial_forward_batched(x, wfp, bfp, n_label, tb=tb)


def reference(x, w1, b1, w2, b2):
    # ModelMultinomial.forward at inference: two linears, no activation.
    return (x @ w1 + b1) @ w2 + b2


if __name__ == "__main__":
    # Module hyperparameters (small, consistent with the forward pass).
    n_feature = 32
    latent_dim = 10   # module default
    n_label = 10
    batch = 8

    key = jax.random.PRNGKey(0)
    kx, kxb, kw1, kb1, kw2, kb2 = jax.random.split(key, 6)

    x = jax.random.normal(kx, (batch, n_feature), dtype=jnp.float32)

    # Deterministic parameter init mimicking torch.nn.Linear's uniform bound.
    bound1 = 1.0 / jnp.sqrt(n_feature)
    w1 = jax.random.uniform(kw1, (n_feature, latent_dim), jnp.float32, -bound1, bound1)
    b1 = jax.random.uniform(kb1, (latent_dim,), jnp.float32, -bound1, bound1)
    bound2 = 1.0 / jnp.sqrt(latent_dim)
    w2 = jax.random.uniform(kw2, (latent_dim, n_label), jnp.float32, -bound2, bound2)
    b2 = jax.random.uniform(kb2, (n_label,), jnp.float32, -bound2, bound2)

    # One-time parameter prep (fold + pad, hoisted out of the hot path).
    wfp, bfp, L = prepare_params(w1, b1, w2, b2)

    # --- small-batch, gridless path ---
    out = forward(x, wfp, bfp, L)
    out = jax.block_until_ready(out)
    ref = reference(x, w1, b1, w2, b2)
    assert out.shape == (batch, n_label)
    assert jnp.allclose(out, ref, atol=1e-4, rtol=1e-4)

    # --- batch-tiled path (ragged last tile, weights VMEM-resident, parallel) ---
    big_batch = 2500   # not a multiple of tb -> exercises the ragged last tile
    x_big = jax.random.normal(kxb, (big_batch, n_feature), dtype=jnp.float32)
    out_big = model_multinomial_forward_batched(x_big, wfp, bfp, L, tb=1024)
    out_big = jax.block_until_ready(out_big)
    ref_big = reference(x_big, w1, b1, w2, b2)
    assert out_big.shape == (big_batch, n_label)
    assert jnp.allclose(out_big, ref_big, atol=1e-4, rtol=1e-4)

    print("KERNEL_OK")
</pallas_src>

<mosaic_0001>
module attributes {stable_mosaic.version = 11 : i64} {
  func.func @mlp_fused_kernel(%arg0: memref<8x32xf32, #tpu.memory_space<vmem>>, %arg1: memref<32x128xf32, #tpu.memory_space<vmem>>, %arg2: memref<1x128xf32, #tpu.memory_space<vmem>>, %arg3: memref<8x128xf32, #tpu.memory_space<vmem>>) attributes {dimension_semantics = [], scalar_prefetch = 0 : i64, scratch_operands = 0 : i64, tpu.core_type = #tpu.core_type<tc>} {
    %c0 = arith.constant 0 : index
    %c0_0 = arith.constant 0 : index
    %0 = vector.load %arg0[%c0, %c0_0] : memref<8x32xf32, #tpu.memory_space<vmem>>, vector<8x32xf32>
    %c0_1 = arith.constant 0 : index
    %c0_2 = arith.constant 0 : index
    %1 = vector.load %arg1[%c0_1, %c0_2] : memref<32x128xf32, #tpu.memory_space<vmem>>, vector<32x128xf32>
    %cst = arith.constant dense<0.000000e+00> : vector<8x128xf32>
    %2 = tpu.matmul %0, %1, %cst {dimension_numbers = #tpu.dot_dimension_numbers<[1], [0], [0], [1], [0, 0, 1, 1], [], []>} : vector<8x32xf32>, vector<32x128xf32>, vector<8x128xf32> -> vector<8x128xf32>
    %c0_3 = arith.constant 0 : index
    %c0_4 = arith.constant 0 : index
    %3 = vector.load %arg2[%c0_3, %c0_4] : memref<1x128xf32, #tpu.memory_space<vmem>>, vector<1x128xf32>
    %4 = vector.broadcast %3 : vector<1x128xf32> to vector<8x128xf32>
    %5 = arith.addf %2, %4 : vector<8x128xf32>
    %c0_5 = arith.constant 0 : index
    %c0_6 = arith.constant 0 : index
    %6 = vector.load %arg3[%c0_5, %c0_6] : memref<8x128xf32, #tpu.memory_space<vmem>>, vector<8x128xf32>
    tpu.vector_store %arg3[%c0_5, %c0_6], %5 {strides = array<i32>} : memref<8x128xf32, #tpu.memory_space<vmem>>, vector<8x128xf32>,
    return
  }
}

</mosaic_0001>

<llo_original>
// kernel: tpu_custom_call.1
$region0: #{tpu_custom_call.1}
  #allocation0 [shape = 'u32[]', space=smem, size = 0x4, offset = 0x4, fixed_abs, tag = 'smem constant byte address 0x4 - core index']
  #allocation1 [shape = 'u32[144,128]{1,0:T(1,128)}', space=vmem, size = 0x12000, scoped, tag = 'internal scratch']
  %s0 = inlined_call_operand.hbm [shape: f32[8,32], index: 0, kind: input, shape index: {}]
  %s1 = inlined_call_operand.hbm [shape: f32[32,128], index: 1, kind: input, shape index: {}]
  %s2 = inlined_call_operand.vmem [shape: f32[1,128], index: 2, kind: input, shape index: {}]
  %s3 = inlined_call_operand.hbm [shape: f32[8,128], index: 3, kind: output, shape index: {}]
  %s4 = sld [smem:[#allocation0]]
  $region30: #{tpu_custom_call.1} parent=0
    _
  %s6 = ssub.s32 1, %s4
  %s7 = scalar_select 0, %s6, %s4
  $region1: #{tpu_custom_call.1} parent=0
    #allocation2 [shape = 'u8[4096]{0}', space=vmem, size = 0x1000, scoped, tag = 'input window, operand 0, single buffered']
    #allocation3 [shape = 's32[1]{0}', space=sflag, size = 0x4, scoped, tag = 'scoped memory for tpu_custom_call.1']
    #allocation4 [shape = 's32[1]{0}', space=sflag, size = 0x4, scoped, tag = 'scoped memory for tpu_custom_call.1']
    #allocation5 [shape = 'u8[16384]{0}', space=vmem, size = 0x4000, scoped, tag = 'input window, operand 1, single buffered']
    #allocation6 [shape = 's32[1]{0}', space=sflag, size = 0x4, scoped, tag = 'scoped memory for tpu_custom_call.1']
    #allocation7 [shape = 'u8[4096]{0}', space=vmem, size = 0x1000, scoped, tag = 'output window, operand 0, single buffered']
    %8 = vsyncpa [#allocation3], 0
    %9 = vsyncpa [#allocation6], 0
    %10 = vsyncpa [#allocation4], 0
    // Predicated region
    $region2: #{tpu_custom_call.1} parent=1 // pred_check
      _
    $region3: #{tpu_custom_call.1} parent=1 // pred_check_branch
      %12 = sbr.rel (0) target = $region5
    $region4: #{tpu_custom_call.1} parent=1 // pred_region
      %s14 = ssub.s32 128, 128
      %15 = vsyncadd [#allocation3], %s14
      %s17 = sshll.u32 [#allocation2], 4
      %s18 = int_to_ptr.vmem [resolvable:$true] %s17
      %20 = dma.hbm_to_vmem [thread:$0]  %s0, 128, %s18, [#allocation3]
    $region5: #{tpu_custom_call.1} parent=1 // pred_fallthru
      _
    // Predicated region
    $region6: #{tpu_custom_call.1} parent=1 // pred_check
      _
    $region7: #{tpu_custom_call.1} parent=1 // pred_check_branch
      %22 = sbr.rel (0) target = $region9
    $region8: #{tpu_custom_call.1} parent=1 // pred_region
      %s24 = ssub.s32 512, 512
      %25 = vsyncadd [#allocation6], %s24
      %s26 = sshll.u32 [#allocation5], 4
      %s27 = int_to_ptr.vmem [resolvable:$true] %s26
      %32 = dma.hbm_to_vmem [thread:$0]  %s1, 512, %s27, [#allocation6], 128, 128, 8
    $region9: #{tpu_custom_call.1} parent=1 // pred_fallthru
      _
    // Predicated region
    $region10: #{tpu_custom_call.1} parent=1 // pred_check
      _
    $region11: #{tpu_custom_call.1} parent=1 // pred_check_branch
      %34 = sbr.rel (0) target = $region13
    $region12: #{tpu_custom_call.1} parent=1 // pred_region
      _
    $region13: #{tpu_custom_call.1} parent=1 // pred_fallthru
      _
    // Predicated region
    $region14: #{tpu_custom_call.1} parent=1 // pred_check
      _
    $region15: #{tpu_custom_call.1} parent=1 // pred_check_branch
      %36 = sbr.rel (0) target = $region17
    $region16: #{tpu_custom_call.1} parent=1 // pred_region
      %37 = dma.done [#allocation3], 128
    $region17: #{tpu_custom_call.1} parent=1 // pred_fallthru
      _
    // Predicated region
    $region18: #{tpu_custom_call.1} parent=1 // pred_check
      _
    $region19: #{tpu_custom_call.1} parent=1 // pred_check_branch
      %39 = sbr.rel (0) target = $region21
    $region20: #{tpu_custom_call.1} parent=1 // pred_region
      %40 = dma.done [#allocation6], 512
    $region21: #{tpu_custom_call.1} parent=1 // pred_fallthru
      _
    %v41 = vld [vmem:[#allocation2] sm:$0xff]
    %v42 = vld [vmem:[#allocation5] sm:$0xff]
    %v43 = vld [vmem:[#allocation5 + $0x8] sm:$0xff]
    %v44 = vld [vmem:[#allocation5 + $0x10] sm:$0xff]
    %v45 = vld [vmem:[#allocation5 + $0x18] sm:$0xff]
    %v46 = vld [vmem:[%s2] sm:$0x1]
    %v48 = vlaneseq
    %v49 = vshrl.u32 %v48, 7
    %v50 = vsub.s32 0, %v49
    %v51 = vrot.slane %v46, %v50
    %vm53 = vcmask 261120
    %v55 = vsel %vm53, %v41, 0
    %57 = vmatprep.subr.mxu0 0.0
    %58 = vmatpush1.msra.mxu0 0.0
    %59 = vmatprep.subr.mxu0 0.0
    %60 = vmatpush1.msra.mxu0 0.0
    %61 = vmatprep.subr.mxu0 0.0
    %62 = vmatpush1.msra.mxu0 0.0
    %63 = vmatprep.subr.mxu0 0.0
    %64 = vmatpush1.msra.mxu0 0.0
    %65 = vmatprep.subr.mxu0 0.0
    %66 = vmatpush1.msra.mxu0 0.0
    %67 = vmatprep.subr.mxu0 0.0
    %68 = vmatpush1.msra.mxu0 0.0
    %69 = vmatprep.subr.mxu0 0.0
    %70 = vmatpush1.msra.mxu0 0.0
    %71 = vmatprep.subr.mxu0 0.0
    %72 = vmatpush1.msra.mxu0 0.0
    %73 = vmatprep.subr.mxu0 0.0
    %74 = vmatpush1.msra.mxu0 0.0
    %75 = vmatprep.subr.mxu0 0.0
    %76 = vmatpush1.msra.mxu0 0.0
    %77 = vmatprep.subr.mxu0 0.0
    %78 = vmatpush1.msra.mxu0 0.0
    %79 = vmatprep.subr.mxu0 0.0
    %80 = vmatpush1.msra.mxu0 0.0
    %81 = vmatprep.subr.mxu0 0.0
    %82 = vmatpush1.msra.mxu0 %v45
    %83 = vmatprep.subr.mxu0 0.0
    %84 = vmatpush1.msra.mxu0 %v44
    %85 = vmatprep.subr.mxu0 0.0
    %86 = vmatpush1.msra.mxu0 %v43
    %87 = vmatprep.subr.mxu0 0.0
    %88 = vmatpush1.msra.mxu0 %v42
    %89 = vmatprep.subr.mxu0 0.0
    %90 = vmatpush2.msra.mxu0 0.0
    %91 = vmatprep.subr.mxu0 0.0
    %92 = vmatpush2.msra.mxu0 0.0
    %93 = vmatprep.subr.mxu0 0.0
    %94 = vmatpush2.msra.mxu0 0.0
    %95 = vmatprep.subr.mxu0 0.0
    %96 = vmatpush2.msra.mxu0 0.0
    %97 = vmatprep.subr.mxu0 0.0
    %98 = vmatpush2.msra.mxu0 0.0
    %99 = vmatprep.subr.mxu0 0.0
    %100 = vmatpush2.msra.mxu0 0.0
    %101 = vmatprep.subr.mxu0 0.0
    %102 = vmatpush2.msra.mxu0 0.0
    %103 = vmatprep.subr.mxu0 0.0
    %104 = vmatpush2.msra.mxu0 0.0
    %105 = vmatprep.subr.mxu0 0.0
    %106 = vmatpush2.msra.mxu0 0.0
    %107 = vmatprep.subr.mxu0 0.0
    %108 = vmatpush2.msra.mxu0 0.0
    %109 = vmatprep.subr.mxu0 0.0
    %110 = vmatpush2.msra.mxu0 0.0
    %111 = vmatprep.subr.mxu0 0.0
    %112 = vmatpush2.msra.mxu0 0.0
    %113 = vmatprep.subr.mxu0 0.0
    %114 = vmatpush2.msra.mxu0 0.0
    %115 = vmatprep.subr.mxu0 0.0
    %116 = vmatpush2.msra.mxu0 0.0
    %117 = vmatprep.subr.mxu0 0.0
    %118 = vmatpush2.msra.mxu0 0.0
    %119 = vmatprep.subr.mxu0 0.0
    %120 = vmatpush2.msra.mxu0 0.0
    %121 = vmatprep.mubr.f32.mxu0 0.0
    %122 = vmatmul.mubr.f32.gmra.mxu0 %v55
    %v123 = vpop.f32.mrf.mxu0
    %v124 = vadd.f32 %v51, %v123
    %v125 = vpop.f32.mrf.mxu0
    %126 = vdwg.mxu0
    %127 = vst [vmem:[#allocation7] sm:$0xff] %v124
    // Predicated region
    $region22: #{tpu_custom_call.1} parent=1 // pred_check
      _
    $region23: #{tpu_custom_call.1} parent=1 // pred_check_branch
      %129 = sbr.rel (0) target = $region25
    $region24: #{tpu_custom_call.1} parent=1 // pred_region
      %s131 = ssub.s32 128, 128
      %132 = vsyncadd [#allocation4], %s131
      %s134 = sshll.u32 [#allocation7], 4
      %s135 = int_to_ptr.vmem [resolvable:$true] %s134
      %137 = dma.vmem_to_hbm [thread:$0]  %s135, 128, %s3, [#allocation4]
    $region25: #{tpu_custom_call.1} parent=1 // pred_fallthru
      _
    // Predicated region
    $region26: #{tpu_custom_call.1} parent=1 // pred_check
      _
    $region27: #{tpu_custom_call.1} parent=1 // pred_check_branch
      %139 = sbr.rel (0) target = $region29
    $region28: #{tpu_custom_call.1} parent=1 // pred_region
      %140 = dma.done [#allocation4], 128
    $region29: #{tpu_custom_call.1} parent=1 // pred_fallthru
      _
    %141 = vsyncpa [#allocation3], 1
    %142 = vsyncpa [#allocation6], 1
    %143 = vsyncpa [#allocation4], 1

</llo_original>
